<compile_context>
chip_gen: v7x
topology: tpu7x:2x2x1
jax: 0.10.0
libtpu: 0.0.40
codegen_flags: <defaults>
</compile_context>

<pallas_src>
import numpy as np

import jax
import jax.numpy as jnp
from jax import lax
from jax.experimental import pallas as pl
from jax.experimental.pallas import tpu as pltpu

# ---------------- configuration (small, consistent with the module) ----------------
BATCH = 2
NUM_IMG_EMBEDS = 6
SEQ = NUM_IMG_EMBEDS + 2          # +2 for [CLS] and [SEP]
IMG_HIDDEN = 64                   # args.img_hidden_sz
HIDDEN = 32                       # args.hidden_sz
VOCAB = 30
MAX_POS = 16
TYPE_VOCAB = 2
CLS_ID = 1                        # args.vocab.stoi['[CLS]']
SEP_ID = 2                        # args.vocab.stoi['[SEP]']
LN_EPS = 1e-12                    # BERT-style LayerNorm eps

# ---------------- packed-constant buffer layout (all pieces 8-row aligned) ----------
R_ROWS = BATCH * SEQ              # 16 output rows
C_ROWS = BATCH * NUM_IMG_EMBEDS   # 12 image-feature rows
assert IMG_HIDDEN % 8 == 0 and R_ROWS % 8 == 0
assert C_ROWS <= HIDDEN, "sel matrix is padded to HIDDEN lanes; widen buffer if this grows"

W_OFF = 0                          # (IMG_HIDDEN, H)  linear weight, pre-transposed
BASE_OFF = W_OFF + IMG_HIDDEN      # (R_ROWS, H)      pos + cls/bias/sep + type_emb[0], batch-tiled
SEL_OFF = BASE_OFF + R_ROWS        # (R_ROWS, H)      0/1 scatter matrix, lanes [0, C_ROWS) valid
TD_OFF = SEL_OFF + R_ROWS          # row TD_OFF       type_emb[1] - type_emb[0]
G_OFF = TD_OFF + 8                 # row G_OFF        LayerNorm gamma
B_OFF = G_OFF + 8                  # row B_OFF        LayerNorm beta
PACKED_ROWS = B_OFF + 8            # 120 rows total (~15 KiB)


# ---------------- Pallas kernel ----------------
def _img_bert_emb_kernel(x_ref, tt_ref, c_ref, o_ref):
    # x_ref : (C_ROWS, IMG_HIDDEN)  image features, flattened over batch
    # tt_ref: (R_ROWS, 1) int32     token_type_ids, flattened over batch
    # c_ref : (PACKED_ROWS, HIDDEN) packed constants (see layout above)
    # o_ref : (R_ROWS, HIDDEN)
    x = x_ref[...]

    # Image-feature projection on the MXU: (C_ROWS, H)
    w = c_ref[W_OFF:W_OFF + IMG_HIDDEN, :]
    proj = jnp.dot(x, w, preferred_element_type=jnp.float32)

    # Scatter projected image rows into their sequence slots (rows 1..N_IMG of every
    # SEQ-row group) with the baked 0/1 selection matrix on the otherwise-idle MXU.
    sel = c_ref[SEL_OFF:SEL_OFF + R_ROWS, :][:, :C_ROWS]          # (R_ROWS, C_ROWS)
    scat = jnp.dot(sel, proj, preferred_element_type=jnp.float32)  # (R_ROWS, H)

    # addend = (pos + cls/bias/sep + type0) + tt * (type1 - type0); exact for tt∈{0,1}.
    base = c_ref[BASE_OFF:BASE_OFF + R_ROWS, :]                    # (R_ROWS, H)
    tdelta = c_ref[TD_OFF:TD_OFF + 1, :]                           # (1, H)
    tt = tt_ref[...].astype(jnp.float32)                           # (R_ROWS, 1)
    t = scat + base + tt * tdelta

    # LayerNorm over hidden axis; independent reductions (E[t^2] - mean^2).
    mean = jnp.mean(t, axis=-1, keepdims=True)
    msq = jnp.mean(t * t, axis=-1, keepdims=True)
    var = msq - mean * mean
    normed = (t - mean) * lax.rsqrt(var + LN_EPS)

    gamma = c_ref[G_OFF:G_OFF + 1, :]
    beta = c_ref[B_OFF:B_OFF + 1, :]
    o_ref[...] = (normed * gamma + beta).astype(o_ref.dtype)


def image_bert_embeddings_pallas(x2d, tt2d, packed):
    return pl.pallas_call(
        _img_bert_emb_kernel,
        out_shape=jax.ShapeDtypeStruct((R_ROWS, HIDDEN), jnp.float32),
        grid=(1,),
        in_specs=[
            pl.BlockSpec(x2d.shape, lambda i: (0, 0)),
            pl.BlockSpec(tt2d.shape, lambda i: (0, 0)),
            pl.BlockSpec(packed.shape, lambda i: (0, 0)),
        ],
        out_specs=pl.BlockSpec((R_ROWS, HIDDEN), lambda i: (0, 0)),
        compiler_params=pltpu.CompilerParams(
            dimension_semantics=("arbitrary",)),
    )(x2d, tt2d, packed)


# ---------------- parameter init (all parameter-only precompute lives here) ----------
def _build_sel_np():
    """Trace-time 0/1 scatter matrix, padded to HIDDEN lanes for the packed buffer."""
    sel = np.zeros((R_ROWS, HIDDEN), np.float32)
    for b in range(BATCH):
        for k in range(NUM_IMG_EMBEDS):
            sel[b * SEQ + 1 + k, b * NUM_IMG_EMBEDS + k] = 1.0
    return sel


def _pad8(rows):
    r = (-rows.shape[0]) % 8
    if r == 0:
        return rows
    return jnp.concatenate([rows, jnp.zeros((r, HIDDEN), jnp.float32)], axis=0)


def _pack_consts(w_t, img_b, word_emb, pos_emb, type_emb, gamma, beta):
    cls_row = word_emb[CLS_ID][None, :]                                   # (1, H)
    sep_row = word_emb[SEP_ID][None, :]                                   # (1, H)
    bias_rows = jnp.broadcast_to(img_b[None, :], (NUM_IMG_EMBEDS, HIDDEN))
    static_rows = jnp.concatenate([cls_row, bias_rows, sep_row], axis=0)  # (SEQ, H)
    base_seq = pos_emb[:SEQ] + static_rows + type_emb[0][None, :]         # (SEQ, H)
    base = jnp.tile(base_seq, (BATCH, 1))                                 # (R_ROWS, H)

    packed = jnp.concatenate(
        [
            w_t,                                        # rows [W_OFF, BASE_OFF)
            base,                                       # rows [BASE_OFF, SEL_OFF)
            jnp.asarray(_build_sel_np()),               # rows [SEL_OFF, TD_OFF)
            _pad8((type_emb[1] - type_emb[0])[None, :]),  # row TD_OFF
            _pad8(gamma[None, :]),                      # row G_OFF
            _pad8(beta[None, :]),                       # row B_OFF
        ],
        axis=0,
    )
    assert packed.shape == (PACKED_ROWS, HIDDEN)
    return packed


def init_params(key):
    ks = jax.random.split(key, 6)
    ln_gamma = jnp.ones((HIDDEN,), jnp.float32)
    ln_beta = jax.random.normal(ks[5], (HIDDEN,), jnp.float32) * 0.02
    params = {
        # nn.Linear(img_hidden_sz, hidden_sz): weight stored pre-transposed (IH, H)
        "img_w_t": jax.random.normal(ks[0], (IMG_HIDDEN, HIDDEN), jnp.float32) * 0.02,
        "img_b": jax.random.normal(ks[1], (HIDDEN,), jnp.float32) * 0.02,
        "word_emb": jax.random.normal(ks[2], (VOCAB, HIDDEN), jnp.float32) * 0.02,
        "pos_emb": jax.random.normal(ks[3], (MAX_POS, HIDDEN), jnp.float32) * 0.02,
        "type_emb": jax.random.normal(ks[4], (TYPE_VOCAB, HIDDEN), jnp.float32) * 0.02,
        "ln_gamma": ln_gamma,
        "ln_beta": ln_beta,
    }
    # One packed constant buffer -> a single kernel input DMA for ALL parameters.
    params["packed"] = _pack_consts(
        params["img_w_t"], params["img_b"], params["word_emb"],
        params["pos_emb"], params["type_emb"], ln_gamma, ln_beta)
    return params


# ---------------- forward: per-call glue is two metadata reshapes only ----------------
def forward(params, input_imgs, token_type_ids):
    B = input_imgs.shape[0]
    x2d = input_imgs.reshape(B * NUM_IMG_EMBEDS, IMG_HIDDEN)
    tt2d = token_type_ids.reshape(B * SEQ, 1)
    out2d = image_bert_embeddings_pallas(x2d, tt2d, params["packed"])
    return out2d.reshape(B, SEQ, HIDDEN)


def forward_reference(params, input_imgs, token_type_ids):
    """Pure-JAX reference mirroring the PyTorch forward (dropout = identity)."""
    B = input_imgs.shape[0]
    cls_e = jnp.broadcast_to(params["word_emb"][CLS_ID][None, None, :], (B, 1, HIDDEN))
    sep_e = jnp.broadcast_to(params["word_emb"][SEP_ID][None, None, :], (B, 1, HIDDEN))
    img_e = jnp.einsum("bsi,ih->bsh", input_imgs, params["img_w_t"]) + params["img_b"]
    tok = jnp.concatenate([cls_e, img_e, sep_e], axis=1)
    pos = params["pos_emb"][jnp.arange(SEQ)][None, :, :]
    typ = params["type_emb"][token_type_ids]
    e = tok + pos + typ
    mean = jnp.mean(e, axis=-1, keepdims=True)
    var = jnp.mean((e - mean) ** 2, axis=-1, keepdims=True)
    e = (e - mean) * lax.rsqrt(var + LN_EPS)
    return e * params["ln_gamma"] + params["ln_beta"]


if __name__ == "__main__":
    key = jax.random.PRNGKey(0)
    k_params, k_imgs, k_types = jax.random.split(key, 3)

    params = init_params(k_params)
    input_imgs = jax.random.normal(k_imgs, (BATCH, NUM_IMG_EMBEDS, IMG_HIDDEN), jnp.float32)
    token_type_ids = jax.random.randint(k_types, (BATCH, SEQ), 0, TYPE_VOCAB, dtype=jnp.int32)

    fwd = jax.jit(forward)
    out = jax.block_until_ready(fwd(params, input_imgs, token_type_ids))

    ref = forward_reference(params, input_imgs, token_type_ids)
    assert out.shape == (BATCH, SEQ, HIDDEN)
    assert jnp.allclose(out, ref, atol=2e-4, rtol=1e-3), "mismatch vs reference"

    print("KERNEL_OK")
</pallas_src>

<mosaic_0001>
module attributes {stable_mosaic.version = 11 : i64} {
  func.func @_img_bert_emb_kernel(%arg0: i32, %arg1: memref<12x64xf32, #tpu.memory_space<vmem>>, %arg2: memref<16x1xi32, #tpu.memory_space<vmem>>, %arg3: memref<120x32xf32, #tpu.memory_space<vmem>>, %arg4: memref<16x32xf32, #tpu.memory_space<vmem>>) attributes {dimension_semantics = [#tpu.dimension_semantics<arbitrary>], iteration_bounds = array<i64: 1>, scalar_prefetch = 0 : i64, scratch_operands = 0 : i64, tpu.core_type = #tpu.core_type<tc>, window_params = [{pipeline_mode = #tpu.pipeline_mode<synchronous>, transform_indices = @transform_0, window_bounds = array<i64: 12, 64>}, {pipeline_mode = #tpu.pipeline_mode<synchronous>, transform_indices = @transform_1, window_bounds = array<i64: 16, 1>}, {pipeline_mode = #tpu.pipeline_mode<synchronous>, transform_indices = @transform_2, window_bounds = array<i64: 120, 32>}, {pipeline_mode = #tpu.pipeline_mode<synchronous>, transform_indices = @transform_3, window_bounds = array<i64: 16, 32>}]} {
    %c0 = arith.constant 0 : index
    %c0_0 = arith.constant 0 : index
    %0 = vector.load %arg1[%c0, %c0_0] : memref<12x64xf32, #tpu.memory_space<vmem>>, vector<12x64xf32>
    %c0_1 = arith.constant 0 : index
    %c0_2 = arith.constant 0 : index
    %1 = vector.load %arg3[%c0_1, %c0_2] : memref<120x32xf32, #tpu.memory_space<vmem>>, vector<64x32xf32>
    %cst = arith.constant dense<0.000000e+00> : vector<12x32xf32>
    %2 = tpu.matmul %0, %1, %cst {dimension_numbers = #tpu.dot_dimension_numbers<[1], [0], [0], [1], [0, 0, 1, 1], [], []>} : vector<12x64xf32>, vector<64x32xf32>, vector<12x32xf32> -> vector<12x32xf32>
    %c80 = arith.constant 80 : index
    %c0_3 = arith.constant 0 : index
    %3 = vector.load %arg3[%c80, %c0_3] : memref<120x32xf32, #tpu.memory_space<vmem>>, vector<16x32xf32>
    %4 = vector.extract_strided_slice %3 {offsets = [0, 0], sizes = [16, 12], strides = [1, 1]} : vector<16x32xf32> to vector<16x12xf32>
    %cst_4 = arith.constant dense<0.000000e+00> : vector<16x32xf32>
    %5 = tpu.matmul %4, %2, %cst_4 {dimension_numbers = #tpu.dot_dimension_numbers<[1], [0], [0], [1], [0, 0, 1, 1], [], []>} : vector<16x12xf32>, vector<12x32xf32>, vector<16x32xf32> -> vector<16x32xf32>
    %c64 = arith.constant 64 : index
    %c0_5 = arith.constant 0 : index
    %6 = vector.load %arg3[%c64, %c0_5] : memref<120x32xf32, #tpu.memory_space<vmem>>, vector<16x32xf32>
    %c96 = arith.constant 96 : index
    %c0_6 = arith.constant 0 : index
    %7 = vector.load %arg3[%c96, %c0_6] : memref<120x32xf32, #tpu.memory_space<vmem>>, vector<1x32xf32>
    %c0_7 = arith.constant 0 : index
    %c0_8 = arith.constant 0 : index
    %8 = vector.load %arg2[%c0_7, %c0_8] : memref<16x1xi32, #tpu.memory_space<vmem>>, vector<16x1xi32>
    %9 = arith.sitofp %8 : vector<16x1xi32> to vector<16x1xf32>
    %10 = arith.addf %5, %6 : vector<16x32xf32>
    %11 = vector.broadcast %9 : vector<16x1xf32> to vector<16x32xf32>
    %12 = vector.broadcast %7 : vector<1x32xf32> to vector<16x32xf32>
    %13 = arith.mulf %11, %12 : vector<16x32xf32>
    %14 = arith.addf %10, %13 : vector<16x32xf32>
    %cst_9 = arith.constant dense<0.000000e+00> : vector<16xf32>
    %15 = vector.multi_reduction <add>, %14, %cst_9 [1] : vector<16x32xf32> to vector<16xf32>
    %16 = vector.shape_cast %15 : vector<16xf32> to vector<16x1xf32>
    %cst_10 = arith.constant 3.200000e+01 : f32
    %17 = vector.broadcast %cst_10 : f32 to vector<16x1xf32>
    %18 = arith.divf %16, %17 : vector<16x1xf32>
    %19 = arith.mulf %14, %14 : vector<16x32xf32>
    %cst_11 = arith.constant dense<0.000000e+00> : vector<16xf32>
    %20 = vector.multi_reduction <add>, %19, %cst_11 [1] : vector<16x32xf32> to vector<16xf32>
    %21 = vector.shape_cast %20 : vector<16xf32> to vector<16x1xf32>
    %cst_12 = arith.constant 3.200000e+01 : f32
    %22 = vector.broadcast %cst_12 : f32 to vector<16x1xf32>
    %23 = arith.divf %21, %22 : vector<16x1xf32>
    %24 = arith.mulf %18, %18 : vector<16x1xf32>
    %25 = arith.subf %23, %24 : vector<16x1xf32>
    %26 = vector.broadcast %18 : vector<16x1xf32> to vector<16x32xf32>
    %27 = arith.subf %14, %26 : vector<16x32xf32>
    %cst_13 = arith.constant 9.99999996E-13 : f32
    %28 = vector.broadcast %cst_13 : f32 to vector<16x1xf32>
    %29 = arith.addf %25, %28 : vector<16x1xf32>
    %30 = math.rsqrt %29 : vector<16x1xf32>
    %31 = vector.broadcast %30 : vector<16x1xf32> to vector<16x32xf32>
    %32 = arith.mulf %27, %31 : vector<16x32xf32>
    %c104 = arith.constant 104 : index
    %c0_14 = arith.constant 0 : index
    %33 = vector.load %arg3[%c104, %c0_14] : memref<120x32xf32, #tpu.memory_space<vmem>>, vector<1x32xf32>
    %c112 = arith.constant 112 : index
    %c0_15 = arith.constant 0 : index
    %34 = vector.load %arg3[%c112, %c0_15] : memref<120x32xf32, #tpu.memory_space<vmem>>, vector<1x32xf32>
    %35 = vector.broadcast %33 : vector<1x32xf32> to vector<16x32xf32>
    %36 = arith.mulf %32, %35 : vector<16x32xf32>
    %37 = vector.broadcast %34 : vector<1x32xf32> to vector<16x32xf32>
    %38 = arith.addf %36, %37 : vector<16x32xf32>
    %c0_16 = arith.constant 0 : index
    %c0_17 = arith.constant 0 : index
    %39 = vector.load %arg4[%c0_16, %c0_17] : memref<16x32xf32, #tpu.memory_space<vmem>>, vector<16x32xf32>
    tpu.vector_store %arg4[%c0_16, %c0_17], %38 {strides = array<i32>} : memref<16x32xf32, #tpu.memory_space<vmem>>, vector<16x32xf32>,
    return
  }
  func.func @transform_0(%arg0: i32) -> (i32, i32) {
    %c0_i32 = arith.constant 0 : i32
    %c0_i32_0 = arith.constant 0 : i32
    %c0_i32_1 = arith.constant 0 : i32
    return %c0_i32, %c0_i32_0 : i32, i32
  }
  func.func @transform_1(%arg0: i32) -> (i32, i32) {
    %c0_i32 = arith.constant 0 : i32
    %c0_i32_0 = arith.constant 0 : i32
    %c0_i32_1 = arith.constant 0 : i32
    return %c0_i32, %c0_i32_0 : i32, i32
  }
  func.func @transform_2(%arg0: i32) -> (i32, i32) {
    %c0_i32 = arith.constant 0 : i32
    %c0_i32_0 = arith.constant 0 : i32
    %c0_i32_1 = arith.constant 0 : i32
    return %c0_i32, %c0_i32_0 : i32, i32
  }
  func.func @transform_3(%arg0: i32) -> (i32, i32) {
    %c0_i32 = arith.constant 0 : i32
    %c0_i32_0 = arith.constant 0 : i32
    %c0_i32_1 = arith.constant 0 : i32
    return %c0_i32, %c0_i32_0 : i32, i32
  }
}

</mosaic_0001>

<llo_original>
// kernel: forward.1
$region0: #{forward.1}
  #allocation0 [shape = 'u32[]', space=smem, size = 0x4, offset = 0x4, fixed_abs, tag = 'smem constant byte address 0x4 - core index']
  #allocation1 [shape = 'u32[144,128]{1,0:T(1,128)}', space=vmem, size = 0x12000, scoped, tag = 'internal scratch']
  %s0 = inlined_call_operand.vmem [shape: f32[12,64], index: 0, kind: input, shape index: {}]
  %s1 = inlined_call_operand.vmem [shape: s32[16,1], index: 1, kind: input, shape index: {}]
  %s2 = inlined_call_operand.vmem [shape: f32[120,32], index: 2, kind: input, shape index: {}]
  %s3 = inlined_call_operand.hbm [shape: f32[16,32], index: 3, kind: output, shape index: {}]
  %s4 = sld [smem:[#allocation0]]
  $region22: #{forward.1} parent=0
    _
  %s6 = ssub.s32 1, %s4
  %s7 = scalar_select 0, %s6, %s4
  $region1: #{forward.1} parent=0
    #allocation2 [shape = 'u8[8192]{0}', space=vmem, size = 0x2000, scoped, tag = 'output window, operand 0, single buffered']
    #allocation3 [shape = 's32[1]{0}', space=sflag, size = 0x4, scoped, tag = 'scoped memory for forward.1']
    %8 = vsyncpa [#allocation3], 0
    // Predicated region
    $region2: #{forward.1} parent=1 // pred_check
      _
    $region3: #{forward.1} parent=1 // pred_check_branch
      %10 = sbr.rel (0) target = $region5
    $region4: #{forward.1} parent=1 // pred_region
      _
    $region5: #{forward.1} parent=1 // pred_fallthru
      _
    // Predicated region
    $region6: #{forward.1} parent=1 // pred_check
      _
    $region7: #{forward.1} parent=1 // pred_check_branch
      %12 = sbr.rel (0) target = $region9
    $region8: #{forward.1} parent=1 // pred_region
      _
    $region9: #{forward.1} parent=1 // pred_fallthru
      _
    // Predicated region
    $region10: #{forward.1} parent=1 // pred_check
      _
    $region11: #{forward.1} parent=1 // pred_check_branch
      %14 = sbr.rel (0) target = $region13
    $region12: #{forward.1} parent=1 // pred_region
      _
    $region13: #{forward.1} parent=1 // pred_fallthru
      _
    %v15 = vld [vmem:[%s0] sm:$0xff]
    %v16 = vld [vmem:[%s0 + $0x8] sm:$0xf]
    %v17 = vld [vmem:[%s2] sm:$0xff]
    %v18 = vld [vmem:[%s2 + $0x8] sm:$0xff]
    %v19 = vld [vmem:[%s2 + $0x10] sm:$0xff]
    %v20 = vld [vmem:[%s2 + $0x18] sm:$0xff]
    %v21 = vld [vmem:[%s2 + $0x20] sm:$0xff]
    %v22 = vld [vmem:[%s2 + $0x28] sm:$0xff]
    %v23 = vld [vmem:[%s2 + $0x30] sm:$0xff]
    %v24 = vld [vmem:[%s2 + $0x38] sm:$0xff]
    %vm25 = vcmask 523264
    %v27 = vsel %vm25, %v15, 0
    %v30 = vsel %vm25, %v16, 0
    %32 = vmatprep.subr.mxu0 0.0
    %33 = vmatpush1.msra.mxu0 %v17
    %34 = vmatprep.subr.mxu0 0.0
    %35 = vmatpush1.msra.mxu0 %v18
    %36 = vmatprep.subr.mxu0 0.0
    %37 = vmatpush1.msra.mxu0 %v19
    %38 = vmatprep.subr.mxu0 0.0
    %39 = vmatpush1.msra.mxu0 %v20
    %40 = vmatprep.subr.mxu0 0.0
    %41 = vmatpush1.msra.mxu0 %v21
    %42 = vmatprep.subr.mxu0 0.0
    %43 = vmatpush1.msra.mxu0 %v22
    %44 = vmatprep.subr.mxu0 0.0
    %45 = vmatpush1.msra.mxu0 %v23
    %46 = vmatprep.subr.mxu0 0.0
    %47 = vmatpush1.msra.mxu0 %v24
    %48 = vmatprep.subr.mxu0 0.0
    %49 = vmatpush1.msra.mxu0 0.0
    %50 = vmatprep.subr.mxu0 0.0
    %51 = vmatpush1.msra.mxu0 0.0
    %52 = vmatprep.subr.mxu0 0.0
    %53 = vmatpush1.msra.mxu0 0.0
    %54 = vmatprep.subr.mxu0 0.0
    %55 = vmatpush1.msra.mxu0 0.0
    %56 = vmatprep.subr.mxu0 0.0
    %57 = vmatpush1.msra.mxu0 0.0
    %58 = vmatprep.subr.mxu0 0.0
    %59 = vmatpush1.msra.mxu0 0.0
    %60 = vmatprep.subr.mxu0 0.0
    %61 = vmatpush1.msra.mxu0 0.0
    %62 = vmatprep.subr.mxu0 0.0
    %63 = vmatpush1.msra.mxu0 0.0
    %64 = vmatprep.subr.mxu0 0.0
    %65 = vmatpush1.msra.mxu0 0.0
    %66 = vmatprep.subr.mxu0 0.0
    %67 = vmatpush1.msra.mxu0 0.0
    %68 = vmatprep.subr.mxu0 0.0
    %69 = vmatpush1.msra.mxu0 0.0
    %70 = vmatprep.subr.mxu0 0.0
    %71 = vmatpush1.msra.mxu0 0.0
    %72 = vmatprep.subr.mxu0 0.0
    %73 = vmatpush1.msra.mxu0 0.0
    %74 = vmatprep.subr.mxu0 0.0
    %75 = vmatpush1.msra.mxu0 0.0
    %76 = vmatprep.subr.mxu0 0.0
    %77 = vmatpush1.msra.mxu0 0.0
    %78 = vmatprep.subr.mxu0 0.0
    %79 = vmatpush1.msra.mxu0 0.0
    %80 = vmatprep.subr.mxu0 0.0
    %81 = vmatpush1.msra.mxu0 0.0
    %82 = vmatprep.subr.mxu0 0.0
    %83 = vmatpush1.msra.mxu0 0.0
    %84 = vmatprep.subr.mxu0 0.0
    %85 = vmatpush1.msra.mxu0 0.0
    %86 = vmatprep.subr.mxu0 0.0
    %87 = vmatpush1.msra.mxu0 0.0
    %88 = vmatprep.subr.mxu0 0.0
    %89 = vmatpush1.msra.mxu0 0.0
    %90 = vmatprep.subr.mxu0 0.0
    %91 = vmatpush1.msra.mxu0 0.0
    %92 = vmatprep.subr.mxu0 0.0
    %93 = vmatpush1.msra.mxu0 0.0
    %94 = vmatprep.subr.mxu0 0.0
    %95 = vmatpush1.msra.mxu0 0.0
    %96 = vmatprep.mubr.f32.mxu0 0.0
    %97 = vmatmul.mubr.f32.gmra.mrb[0].mxu0 %v27
    %v98 = vpop.f32.mrb[0].mxu0
    %v99 = vadd.f32 0.0, %v98
    %v100 = vpop.f32.mrb[0].mxu0
    %101 = vmatprep.mubr.f32.mxu0 0.0
    %102 = vmatmul.mubr.f32.gmra.mrb[0].mxu0 %v30
    %v103 = vpop.f32.mrb[0].mxu0
    %v104 = vadd.f32 0.0, %v103
    %v105 = vpop.f32.mrb[0].mxu0
    %106 = vdwg.mxu0
    %v107 = vld [vmem:[%s2 + $0x50] sm:$0xff]
    %v108 = vld [vmem:[%s2 + $0x58] sm:$0xff]
    %v109 = vld [vmem:[%s2 + $0x40] sm:$0xff]
    %v110 = vld [vmem:[%s2 + $0x48] sm:$0xff]
    %v111 = vld [vmem:[%s2 + $0x60] sm:$0x1]
    %v112 = vld [vmem:[%s1] sm:$0xff]
    %v113 = vld [vmem:[%s1 + $0x8] sm:$0xff]
    %v114 = vcvt.s32.f32 %v112
    %v115 = vcvt.s32.f32 %v113
    %vm116 = vcmask 97280
    %v118 = vsel %vm116, %v107, 0
    %v121 = vsel %vm116, %v108, 0
    %vm123 = vcmask 1043456
    %v125 = vsel %vm123, %v104, 0
    %127 = vmatprep.subr.mxu0 0.0
    %128 = vmatpush1.msra.mxu0 %v99
    %129 = vmatprep.subr.mxu0 0.0
    %130 = vmatpush1.msra.mxu0 %v125
    %131 = vmatprep.subr.mxu0 0.0
    %132 = vmatpush1.msra.mxu0 0.0
    %133 = vmatprep.subr.mxu0 0.0
    %134 = vmatpush1.msra.mxu0 0.0
    %135 = vmatprep.subr.mxu0 0.0
    %136 = vmatpush1.msra.mxu0 0.0
    %137 = vmatprep.subr.mxu0 0.0
    %138 = vmatpush1.msra.mxu0 0.0
    %139 = vmatprep.subr.mxu0 0.0
    %140 = vmatpush1.msra.mxu0 0.0
    %141 = vmatprep.subr.mxu0 0.0
    %142 = vmatpush1.msra.mxu0 0.0
    %143 = vmatprep.subr.mxu0 0.0
    %144 = vmatpush1.msra.mxu0 0.0
    %145 = vmatprep.subr.mxu0 0.0
    %146 = vmatpush1.msra.mxu0 0.0
    %147 = vmatprep.subr.mxu0 0.0
    %148 = vmatpush1.msra.mxu0 0.0
    %149 = vmatprep.subr.mxu0 0.0
    %150 = vmatpush1.msra.mxu0 0.0
    %151 = vmatprep.subr.mxu0 0.0
    %152 = vmatpush1.msra.mxu0 0.0
    %153 = vmatprep.subr.mxu0 0.0
    %154 = vmatpush1.msra.mxu0 0.0
    %155 = vmatprep.subr.mxu0 0.0
    %156 = vmatpush1.msra.mxu0 0.0
    %157 = vmatprep.subr.mxu0 0.0
    %158 = vmatpush1.msra.mxu0 0.0
    %159 = vmatprep.subr.mxu0 0.0
    %160 = vmatpush1.msra.mxu0 0.0
    %161 = vmatprep.subr.mxu0 0.0
    %162 = vmatpush1.msra.mxu0 0.0
    %163 = vmatprep.subr.mxu0 0.0
    %164 = vmatpush1.msra.mxu0 0.0
    %165 = vmatprep.subr.mxu0 0.0
    %166 = vmatpush1.msra.mxu0 0.0
    %167 = vmatprep.subr.mxu0 0.0
    %168 = vmatpush1.msra.mxu0 0.0
    %169 = vmatprep.subr.mxu0 0.0
    %170 = vmatpush1.msra.mxu0 0.0
    %171 = vmatprep.subr.mxu0 0.0
    %172 = vmatpush1.msra.mxu0 0.0
    %173 = vmatprep.subr.mxu0 0.0
    %174 = vmatpush1.msra.mxu0 0.0
    %175 = vmatprep.subr.mxu0 0.0
    %176 = vmatpush1.msra.mxu0 0.0
    %177 = vmatprep.subr.mxu0 0.0
    %178 = vmatpush1.msra.mxu0 0.0
    %179 = vmatprep.subr.mxu0 0.0
    %180 = vmatpush1.msra.mxu0 0.0
    %181 = vmatprep.subr.mxu0 0.0
    %182 = vmatpush1.msra.mxu0 0.0
    %183 = vmatprep.subr.mxu0 0.0
    %184 = vmatpush1.msra.mxu0 0.0
    %185 = vmatprep.subr.mxu0 0.0
    %186 = vmatpush1.msra.mxu0 0.0
    %187 = vmatprep.subr.mxu0 0.0
    %188 = vmatpush1.msra.mxu0 0.0
    %189 = vmatprep.subr.mxu0 0.0
    %190 = vmatpush1.msra.mxu0 0.0
    %191 = vmatprep.mubr.f32.mxu0 0.0
    %192 = vmatmul.mubr.f32.gmra.mrb[0].mxu0 %v118
    %v193 = vpop.f32.mrb[0].mxu0
    %v194 = vadd.f32 %v109, %v193
    %v195 = vpop.f32.mrb[0].mxu0
    %196 = vmatprep.mubr.f32.mxu0 0.0
    %197 = vmatmul.mubr.f32.gmra.mrb[0].mxu0 %v121
    %v198 = vpop.f32.mrb[0].mxu0
    %v199 = vadd.f32 %v110, %v198
    %v200 = vpop.f32.mrb[0].mxu0
    %201 = vdwg.mxu0
    %203 = vset.pattern.permute.xlu0 0
    %204 = vperm.xlu0 %203, %v114
    %v205 = vpop.permute.xlu0 %204
    %208 = vset.pattern.permute.xlu0 0
    %209 = vperm.xlu0 %208, %v115
    %v210 = vpop.permute.xlu0 %209
    %v212 = vlaneseq
    %v213 = vshrl.u32 %v212, 7
    %v214 = vsub.s32 0, %v213
    %v215 = vrot.slane %v111, %v214
    %v216 = vmul.f32 %v205, %v215
    %v217 = vmul.f32 %v210, %v215
    %v218 = vadd.f32 %v194, %v216
    %v219 = vadd.f32 %v199, %v217
    %vm220 = vcmask 261120
    %v221 = vsel %vm220, %v218, 0.0
    %222 = vadd.xlane.f32.xlu0 %v221
    %v223 = vpop.xlane.xlu0 %222
    %v224 = vsel %vm220, %v219, 0.0
    %225 = vadd.xlane.f32.xlu0 %v224
    %v226 = vpop.xlane.xlu0 %225
    %v227 = vrcp.pop 32.0
    %v228 = vmul.f32 %v223, %v227
    %v229 = vmul.f32 %v226, %v227
    %v230 = vmul.f32 %v218, %v218
    %v231 = vmul.f32 %v219, %v219
    %v232 = vsel %vm220, %v230, 0.0
    %233 = vadd.xlane.f32.xlu0 %v232
    %v234 = vpop.xlane.xlu0 %233
    %v235 = vsel %vm220, %v231, 0.0
    %236 = vadd.xlane.f32.xlu0 %v235
    %v237 = vpop.xlane.xlu0 %236
    %v238 = vmul.f32 %v234, %v227
    %v239 = vmul.f32 %v237, %v227
    %v240 = vmul.f32 %v228, %v228
    %v241 = vmul.f32 %v229, %v229
    %v242 = vsub.f32 %v238, %v240
    %v243 = vsub.f32 %v239, %v241
    %v244 = vsub.f32 %v218, %v228
    %v245 = vsub.f32 %v219, %v229
    %v246 = vadd.f32 %v242, 1e-12
    %v247 = vadd.f32 %v243, 1e-12
    %v248 = vrsqrt.pop %v246
    %v249 = vrsqrt.pop %v247
    %v250 = vmul.f32 %v244, %v248
    %v251 = vmul.f32 %v245, %v249
    %v252 = vld [vmem:[%s2 + $0x68] sm:$0x1]
    %v253 = vld [vmem:[%s2 + $0x70] sm:$0x1]
    %v254 = vlaneseq
    %v255 = vshrl.u32 %v254, 7
    %v256 = vsub.s32 0, %v255
    %v257 = vrot.slane %v252, %v256
    %v258 = vmul.f32 %v250, %v257
    %v259 = vmul.f32 %v251, %v257
    %v260 = vlaneseq
    %v261 = vshrl.u32 %v260, 7
    %v262 = vsub.s32 0, %v261
    %v263 = vrot.slane %v253, %v262
    %v264 = vadd.f32 %v258, %v263
    %v265 = vadd.f32 %v259, %v263
    %266 = vst.msk [vmem:[#allocation2] sm:$0xff] %vm220, %v264
    %267 = vst.msk [vmem:[#allocation2 + $0x8] sm:$0xff] %vm220, %v265
    // Predicated region
    $region14: #{forward.1} parent=1 // pred_check
      _
    $region15: #{forward.1} parent=1 // pred_check_branch
      %269 = sbr.rel (0) target = $region17
    $region16: #{forward.1} parent=1 // pred_region
      %s271 = ssub.s32 256, 256
      %272 = vsyncadd [#allocation3], %s271
      %s273 = sshll.u32 [#allocation2], 4
      %s274 = int_to_ptr.vmem [resolvable:$true] %s273
      %279 = dma.vmem_to_hbm [thread:$0]  %s274, 256, %s3, [#allocation3], 128, 128, 8
    $region17: #{forward.1} parent=1 // pred_fallthru
      _
    // Predicated region
    $region18: #{forward.1} parent=1 // pred_check
      _
    $region19: #{forward.1} parent=1 // pred_check_branch
      %281 = sbr.rel (0) target = $region21
    $region20: #{forward.1} parent=1 // pred_region
      %282 = dma.done [#allocation3], 256
    $region21: #{forward.1} parent=1 // pred_fallthru
      _
    %283 = vsyncpa [#allocation3], 1

</llo_original>
